<compile_context>
chip_gen: v7x
topology: tpu7x:2x2x1
jax: 0.10.0
libtpu: 0.0.40
codegen_flags: <defaults>
</compile_context>

<pallas_src>
import jax
import jax.numpy as jnp
from jax.experimental import pallas as pl
from jax.experimental.pallas import tpu as pltpu

_LN_EPS = 1e-5


def _ffn_residual_kernel(x_ref, w1_ref, b1_ref, seg_ref, w2_ref, b2_ref, o_ref):
    # x_ref  : (tm, lane)     f32   packed input rows (lane = pack*dim, 128-lane dense)
    # w1_ref : (lane, hid_p)  bf16  block-diagonal Linear1 weight (hid_p = pack*hid)
    # b1_ref : (1, hid_p)     f32   tiled Linear1 bias
    # seg_ref: (hid_p, hid_p) bf16  per-segment averaging matrix (1/hid within a segment)
    # w2_ref : (hid_p, lane)  bf16  block-diagonal Linear2 weight (LN affine folded in)
    # b2_ref : (1, lane)      f32   tiled, folded Linear2 bias
    # o_ref  : (tm, lane)     f32   packed output rows
    x = x_ref[...]
    xb = x.astype(jnp.bfloat16)

    # Linear1 + ReLU: single-pass bf16 MXU, f32 accumulation, f32 bias add.
    h = jnp.dot(xb, w1_ref[...], preferred_element_type=jnp.float32) + b1_ref[...]
    h = jnp.maximum(h, 0.0)

    # Centered two-pass LayerNorm statistics, one bf16 MXU pass each.  The
    # segment matrix broadcasts each segment's mean back across its lanes, so
    # no cross-lane relayout is needed.  1/hid is exact in bf16.
    seg = seg_ref[...]
    mean = jnp.dot(h.astype(jnp.bfloat16), seg, preferred_element_type=jnp.float32)
    d = h - mean
    var = jnp.dot((d * d).astype(jnp.bfloat16), seg, preferred_element_type=jnp.float32)
    var = jnp.maximum(var, 0.0)                      # guard against round-off negatives
    hn = d * jax.lax.rsqrt(var + _LN_EPS)

    # Linear2 (gamma/beta folded into w2/b2) + residual, residual kept in f32.
    y = jnp.dot(hn.astype(jnp.bfloat16), w2_ref[...], preferred_element_type=jnp.float32)
    o_ref[...] = (x + y + b2_ref[...]).astype(o_ref.dtype)


def _round_up(a, b):
    return ((a + b - 1) // b) * b


def _tpu_defaults():
    """Per-generation (block_rows, vmem_limit_bytes)."""
    block_rows, vmem = 8192, 32 * 1024 * 1024        # conservative fallback
    try:
        kind = jax.devices()[0].device_kind.lower()
    except Exception:
        kind = ""
    if ("v5" in kind) or ("v6" in kind):
        # 128 MiB VMEM, single TensorCore: go big.
        block_rows, vmem = 16384, 64 * 1024 * 1024
    elif "7" in kind:
        # v7x: 64 MiB VMEM, 2 TensorCores: cap tiles, keep headroom.
        block_rows, vmem = 8192, 48 * 1024 * 1024
    return block_rows, vmem


def feed_forward_residual_block(x, w1, b1, gamma, beta, w2, b2, *,
                                block_rows=None, vmem_limit_bytes=None):
    """out = x + Linear2(LayerNorm(ReLU(Linear1(x)))); x: (..., dim), same shape/dtype out."""
    orig_shape = x.shape
    dim = orig_shape[-1]
    hid = w1.shape[1]

    default_rows, default_vmem = _tpu_defaults()
    if block_rows is None:
        block_rows = default_rows
    if vmem_limit_bytes is None:
        vmem_limit_bytes = default_vmem

    x2d = x.reshape(-1, dim)
    m = x2d.shape[0]

    # Pack several logical rows per physical row so the lane axis is 128-wide.
    pack = 128 // dim if (dim < 128 and 128 % dim == 0) else 1
    lane = pack * dim
    hid_p = pack * hid

    f32 = jnp.float32
    bf16 = jnp.bfloat16

    # Fold the LayerNorm affine into Linear2 (wrapper-side, free).
    w2_eff = gamma.astype(f32)[:, None] * w2.astype(f32)
    b2_eff = beta.astype(f32) @ w2.astype(f32) + b2.astype(f32)

    eye_p = jnp.eye(pack, dtype=f32)
    # bf16 constants: single-pass MXU operands, half the resident VMEM.
    w1_bd = jnp.kron(eye_p, w1.astype(f32)).astype(bf16)                         # (lane, hid_p)
    w2_bd = jnp.kron(eye_p, w2_eff).astype(bf16)                                 # (hid_p, lane)
    seg_avg = jnp.kron(eye_p, jnp.full((hid, hid), 1.0 / hid, f32)).astype(bf16) # (hid_p, hid_p)
    b1_t = jnp.tile(b1.astype(f32), pack).reshape(1, hid_p)                      # f32 bias adds
    b2_t = jnp.tile(b2_eff, pack).reshape(1, lane)

    # Pad only to a multiple of `pack` (<= pack-1 rows); no full-tile padding.
    rem = m % pack
    if rem:
        x2d = jnp.pad(x2d, ((0, pack - rem), (0, 0)))
    mp = x2d.shape[0] // pack
    x_packed = x2d.reshape(mp, lane)                  # free row-major reshape

    # Row tiling over packed rows: large 8-aligned tiles; even tile count so
    # v7x's two TensorCores get balanced work; last block may be partial
    # (Pallas masks the out-of-bounds writeback).
    tm_cap = max(8, _round_up(max(block_rows // pack, 8), 8))
    if mp >= 16:
        if mp > tm_cap:
            ntiles = pl.cdiv(mp, tm_cap)
            if ntiles % 2:
                ntiles += 1
        else:
            ntiles = 2
        tm = _round_up(pl.cdiv(mp, ntiles), 8)
    else:
        tm = mp                                       # single block == full (tiny) array
    grid = pl.cdiv(mp, tm)

    out_packed = pl.pallas_call(
        _ffn_residual_kernel,
        out_shape=jax.ShapeDtypeStruct((mp, lane), x.dtype),
        grid_spec=pltpu.PrefetchScalarGridSpec(
            num_scalar_prefetch=0,
            grid=(grid,),
            in_specs=[
                pl.BlockSpec((tm, lane), lambda i: (i, 0)),        # x tile (lane-dense)
                pl.BlockSpec((lane, hid_p), lambda i: (0, 0)),     # W1 (block-diag, bf16)
                pl.BlockSpec((1, hid_p), lambda i: (0, 0)),        # b1 (tiled, f32)
                pl.BlockSpec((hid_p, hid_p), lambda i: (0, 0)),    # segment-averaging matrix
                pl.BlockSpec((hid_p, lane), lambda i: (0, 0)),     # W2 (block-diag, affine folded)
                pl.BlockSpec((1, lane), lambda i: (0, 0)),         # b2 (tiled, folded, f32)
            ],
            out_specs=pl.BlockSpec((tm, lane), lambda i: (i, 0)),  # lane-dense output slab
        ),
        compiler_params=pltpu.CompilerParams(
            dimension_semantics=("parallel",),
            vmem_limit_bytes=vmem_limit_bytes),
    )(x_packed, w1_bd, b1_t, seg_avg, w2_bd, b2_t)

    out = out_packed.reshape(mp * pack, dim)
    if mp * pack != m:
        out = out[:m]                                  # only on ragged (m % pack != 0) sizes
    return out.reshape(orig_shape)


def _reference(x, w1, b1, gamma, beta, w2, b2):
    h = jnp.maximum(x @ w1 + b1, 0.0)
    mean = jnp.mean(h, axis=-1, keepdims=True)
    var = jnp.mean((h - mean) ** 2, axis=-1, keepdims=True)
    hn = (h - mean) / jnp.sqrt(var + _LN_EPS) * gamma + beta
    return x + hn @ w2 + b2


if __name__ == "__main__":
    # Module config: dim=32, expansion_multiplier=2 -> hidden=64
    dim = 32
    expansion = 2
    hid = dim * expansion

    key = jax.random.PRNGKey(0)
    kx, kx2, kx3, k1, k2, k3, k4, k5, k6 = jax.random.split(key, 9)

    # Deterministic synthetic parameters (shapes from nn.Linear / nn.LayerNorm)
    w1 = jax.random.normal(k1, (dim, hid), jnp.float32) * 0.1        # Linear1 weight (in, out)
    b1 = jax.random.normal(k2, (hid,), jnp.float32) * 0.1            # Linear1 bias
    gamma = 1.0 + 0.1 * jax.random.normal(k3, (hid,), jnp.float32)   # LayerNorm weight
    beta = 0.1 * jax.random.normal(k4, (hid,), jnp.float32)          # LayerNorm bias
    w2 = jax.random.normal(k5, (hid, dim), jnp.float32) * 0.1        # Linear2 weight (in, out)
    b2 = jax.random.normal(k6, (dim,), jnp.float32) * 0.1            # Linear2 bias

    # Small shape (batch=2, seq=8, dim=32): single full block.
    x_small = jax.random.normal(kx, (2, 8, dim), jnp.float32)
    # Larger shape: two balanced tiles, no padding.
    x_big = jax.random.normal(kx2, (4, 96, dim), jnp.float32)
    # Ragged shape: pack-remainder padding + partial (masked) last block.
    x_ragged = jax.random.normal(kx3, (5, 27, dim), jnp.float32)

    for x in (x_small, x_big, x_ragged):
        out = jax.block_until_ready(
            feed_forward_residual_block(x, w1, b1, gamma, beta, w2, b2))
        ref = _reference(x.reshape(-1, dim), w1, b1, gamma, beta, w2, b2).reshape(x.shape)
        assert out.shape == x.shape and out.dtype == x.dtype
        err = jnp.abs(out - ref)
        # The kernel uses single-pass bf16 MXU operands (f32 accumulation) per the
        # performance guidance, so compare to the f32 reference at bf16-level
        # tolerances (unit-scale activations through three matmul stages).
        assert bool(jnp.all(err <= 3e-2 + 3e-2 * jnp.abs(ref))), "mismatch vs reference"
        assert float(jnp.mean(err)) < 5e-3, "mean error too large vs reference"

    print("KERNEL_OK")
</pallas_src>

<mosaic_0001>
module attributes {stable_mosaic.version = 11 : i64} {
  func.func @_ffn_residual_kernel(%arg0: i32, %arg1: memref<4x128xf32, #tpu.memory_space<vmem>>, %arg2: memref<128x256xbf16, #tpu.memory_space<vmem>>, %arg3: memref<1x256xf32, #tpu.memory_space<vmem>>, %arg4: memref<256x256xbf16, #tpu.memory_space<vmem>>, %arg5: memref<256x128xbf16, #tpu.memory_space<vmem>>, %arg6: memref<1x128xf32, #tpu.memory_space<vmem>>, %arg7: memref<4x128xf32, #tpu.memory_space<vmem>>) attributes {dimension_semantics = [#tpu.dimension_semantics<parallel>], iteration_bounds = array<i64: 1>, scalar_prefetch = 0 : i64, scratch_operands = 0 : i64, tpu.core_type = #tpu.core_type<tc>, window_params = [{transform_indices = @transform_0, window_bounds = array<i64: 4, 128>}, {pipeline_mode = #tpu.pipeline_mode<synchronous>, transform_indices = @transform_1, window_bounds = array<i64: 128, 256>}, {pipeline_mode = #tpu.pipeline_mode<synchronous>, transform_indices = @transform_2, window_bounds = array<i64: 1, 256>}, {pipeline_mode = #tpu.pipeline_mode<synchronous>, transform_indices = @transform_3, window_bounds = array<i64: 256, 256>}, {pipeline_mode = #tpu.pipeline_mode<synchronous>, transform_indices = @transform_4, window_bounds = array<i64: 256, 128>}, {pipeline_mode = #tpu.pipeline_mode<synchronous>, transform_indices = @transform_5, window_bounds = array<i64: 1, 128>}, {transform_indices = @transform_6, window_bounds = array<i64: 4, 128>}]} {
    %c0 = arith.constant 0 : index
    %c0_0 = arith.constant 0 : index
    %0 = vector.load %arg1[%c0, %c0_0] : memref<4x128xf32, #tpu.memory_space<vmem>>, vector<4x128xf32>
    %1 = arith.truncf %0 : vector<4x128xf32> to vector<4x128xbf16>
    %c0_1 = arith.constant 0 : index
    %c0_2 = arith.constant 0 : index
    %2 = vector.load %arg2[%c0_1, %c0_2] : memref<128x256xbf16, #tpu.memory_space<vmem>>, vector<128x256xbf16>
    %cst = arith.constant dense<0.000000e+00> : vector<4x256xf32>
    %3 = tpu.matmul %1, %2, %cst {dimension_numbers = #tpu.dot_dimension_numbers<[1], [0], [0], [1], [0, 0, 1, 1], [], []>} : vector<4x128xbf16>, vector<128x256xbf16>, vector<4x256xf32> -> vector<4x256xf32>
    %c0_3 = arith.constant 0 : index
    %c0_4 = arith.constant 0 : index
    %4 = vector.load %arg3[%c0_3, %c0_4] : memref<1x256xf32, #tpu.memory_space<vmem>>, vector<1x256xf32>
    %5 = vector.broadcast %4 : vector<1x256xf32> to vector<4x256xf32>
    %6 = arith.addf %3, %5 : vector<4x256xf32>
    %cst_5 = arith.constant 0.000000e+00 : f32
    %7 = vector.broadcast %cst_5 : f32 to vector<4x256xf32>
    %8 = arith.maximumf %6, %7 : vector<4x256xf32>
    %c0_6 = arith.constant 0 : index
    %c0_7 = arith.constant 0 : index
    %9 = vector.load %arg4[%c0_6, %c0_7] : memref<256x256xbf16, #tpu.memory_space<vmem>>, vector<256x256xbf16>
    %10 = arith.truncf %8 : vector<4x256xf32> to vector<4x256xbf16>
    %cst_8 = arith.constant dense<0.000000e+00> : vector<4x256xf32>
    %11 = tpu.matmul %10, %9, %cst_8 {dimension_numbers = #tpu.dot_dimension_numbers<[1], [0], [0], [1], [0, 0, 1, 1], [], []>} : vector<4x256xbf16>, vector<256x256xbf16>, vector<4x256xf32> -> vector<4x256xf32>
    %12 = arith.subf %8, %11 : vector<4x256xf32>
    %13 = arith.mulf %12, %12 : vector<4x256xf32>
    %14 = arith.truncf %13 : vector<4x256xf32> to vector<4x256xbf16>
    %cst_9 = arith.constant dense<0.000000e+00> : vector<4x256xf32>
    %15 = tpu.matmul %14, %9, %cst_9 {dimension_numbers = #tpu.dot_dimension_numbers<[1], [0], [0], [1], [0, 0, 1, 1], [], []>} : vector<4x256xbf16>, vector<256x256xbf16>, vector<4x256xf32> -> vector<4x256xf32>
    %cst_10 = arith.constant 0.000000e+00 : f32
    %16 = vector.broadcast %cst_10 : f32 to vector<4x256xf32>
    %17 = arith.maximumf %15, %16 : vector<4x256xf32>
    %cst_11 = arith.constant 9.99999974E-6 : f32
    %18 = vector.broadcast %cst_11 : f32 to vector<4x256xf32>
    %19 = arith.addf %17, %18 : vector<4x256xf32>
    %20 = math.rsqrt %19 : vector<4x256xf32>
    %21 = arith.mulf %12, %20 : vector<4x256xf32>
    %22 = arith.truncf %21 : vector<4x256xf32> to vector<4x256xbf16>
    %c0_12 = arith.constant 0 : index
    %c0_13 = arith.constant 0 : index
    %23 = vector.load %arg5[%c0_12, %c0_13] : memref<256x128xbf16, #tpu.memory_space<vmem>>, vector<256x128xbf16>
    %cst_14 = arith.constant dense<0.000000e+00> : vector<4x128xf32>
    %24 = tpu.matmul %22, %23, %cst_14 {dimension_numbers = #tpu.dot_dimension_numbers<[1], [0], [0], [1], [0, 0, 1, 1], [], []>} : vector<4x256xbf16>, vector<256x128xbf16>, vector<4x128xf32> -> vector<4x128xf32>
    %25 = arith.addf %0, %24 : vector<4x128xf32>
    %c0_15 = arith.constant 0 : index
    %c0_16 = arith.constant 0 : index
    %26 = vector.load %arg6[%c0_15, %c0_16] : memref<1x128xf32, #tpu.memory_space<vmem>>, vector<1x128xf32>
    %27 = vector.broadcast %26 : vector<1x128xf32> to vector<4x128xf32>
    %28 = arith.addf %25, %27 : vector<4x128xf32>
    %c0_17 = arith.constant 0 : index
    %c0_18 = arith.constant 0 : index
    %29 = vector.load %arg7[%c0_17, %c0_18] : memref<4x128xf32, #tpu.memory_space<vmem>>, vector<4x128xf32>
    tpu.vector_store %arg7[%c0_17, %c0_18], %28 {strides = array<i32>} : memref<4x128xf32, #tpu.memory_space<vmem>>, vector<4x128xf32>,
    return
  }
  func.func @transform_0(%arg0: i32) -> (i32, i32) {
    %c0_i32 = arith.constant 0 : i32
    %c0_i32_0 = arith.constant 0 : i32
    return %arg0, %c0_i32 : i32, i32
  }
  func.func @transform_1(%arg0: i32) -> (i32, i32) {
    %c0_i32 = arith.constant 0 : i32
    %c0_i32_0 = arith.constant 0 : i32
    %c0_i32_1 = arith.constant 0 : i32
    return %c0_i32, %c0_i32_0 : i32, i32
  }
  func.func @transform_2(%arg0: i32) -> (i32, i32) {
    %c0_i32 = arith.constant 0 : i32
    %c0_i32_0 = arith.constant 0 : i32
    %c0_i32_1 = arith.constant 0 : i32
    return %c0_i32, %c0_i32_0 : i32, i32
  }
  func.func @transform_3(%arg0: i32) -> (i32, i32) {
    %c0_i32 = arith.constant 0 : i32
    %c0_i32_0 = arith.constant 0 : i32
    %c0_i32_1 = arith.constant 0 : i32
    return %c0_i32, %c0_i32_0 : i32, i32
  }
  func.func @transform_4(%arg0: i32) -> (i32, i32) {
    %c0_i32 = arith.constant 0 : i32
    %c0_i32_0 = arith.constant 0 : i32
    %c0_i32_1 = arith.constant 0 : i32
    return %c0_i32, %c0_i32_0 : i32, i32
  }
  func.func @transform_5(%arg0: i32) -> (i32, i32) {
    %c0_i32 = arith.constant 0 : i32
    %c0_i32_0 = arith.constant 0 : i32
    %c0_i32_1 = arith.constant 0 : i32
    return %c0_i32, %c0_i32_0 : i32, i32
  }
  func.func @transform_6(%arg0: i32) -> (i32, i32) {
    %c0_i32 = arith.constant 0 : i32
    %c0_i32_0 = arith.constant 0 : i32
    return %arg0, %c0_i32 : i32, i32
  }
}

</mosaic_0001>

<llo_original>
// kernel: tpu_custom_call.1
$region0: #{tpu_custom_call.1}
  #allocation0 [shape = 'u32[]', space=smem, size = 0x4, offset = 0x4, fixed_abs, tag = 'smem constant byte address 0x4 - core index']
  #allocation1 [shape = 'u32[144,128]{1,0:T(1,128)}', space=vmem, size = 0x12000, scoped, tag = 'internal scratch']
  %s0 = inlined_call_operand.hbm [shape: f32[4,128], index: 0, kind: input, shape index: {}]
  %s1 = inlined_call_operand.hbm [shape: bf16[128,256], index: 1, kind: input, shape index: {}]
  %s2 = inlined_call_operand.vmem [shape: f32[1,256], index: 2, kind: input, shape index: {}]
  %s3 = inlined_call_operand.hbm [shape: bf16[256,256], index: 3, kind: input, shape index: {}]
  %s4 = inlined_call_operand.hbm [shape: bf16[256,128], index: 4, kind: input, shape index: {}]
  %s5 = inlined_call_operand.vmem [shape: f32[1,128], index: 5, kind: input, shape index: {}]
  %s6 = inlined_call_operand.hbm [shape: f32[4,128], index: 6, kind: output, shape index: {}]
  %s7 = sld [smem:[#allocation0]]
  $region50: #{tpu_custom_call.1} parent=0
    _
  %s9 = ssub.s32 1, %s7
  %s10 = scalar_select 0, %s9, %s7
  $region1: #{tpu_custom_call.1} parent=0
    #allocation2 [shape = 'u8[2048]{0}', space=vmem, size = 0x800, scoped, tag = 'input window, operand 0, single buffered']
    #allocation3 [shape = 's32[1]{0}', space=sflag, size = 0x4, scoped, tag = 'scoped memory for tpu_custom_call.1']
    #allocation4 [shape = 's32[1]{0}', space=sflag, size = 0x4, scoped, tag = 'scoped memory for tpu_custom_call.1']
    #allocation5 [shape = 'u8[65536]{0}', space=vmem, size = 0x10000, scoped, tag = 'input window, operand 1, single buffered']
    #allocation6 [shape = 's32[1]{0}', space=sflag, size = 0x4, scoped, tag = 'scoped memory for tpu_custom_call.1']
    #allocation7 [shape = 'u8[131072]{0}', space=vmem, size = 0x20000, scoped, tag = 'input window, operand 3, single buffered']
    #allocation8 [shape = 'u8[65536]{0}', space=vmem, size = 0x10000, scoped, tag = 'input window, operand 4, single buffered']
    #allocation9 [shape = 's32[1]{0}', space=sflag, size = 0x4, scoped, tag = 'scoped memory for tpu_custom_call.1']
    #allocation10 [shape = 'u8[2048]{0}', space=vmem, size = 0x800, scoped, tag = 'output window, operand 0, single buffered']
    %11 = vsyncpa [#allocation3], 0
    %12 = vsyncpa [#allocation6], 0
    %13 = vsyncpa [#allocation9], 0
    %14 = vsyncpa [#allocation4], 0
    // Predicated region
    $region2: #{tpu_custom_call.1} parent=1 // pred_check
      _
    $region3: #{tpu_custom_call.1} parent=1 // pred_check_branch
      %16 = sbr.rel (0) target = $region5
    $region4: #{tpu_custom_call.1} parent=1 // pred_region
      %s18 = ssub.s32 64, 64
      %19 = vsyncadd [#allocation3], %s18
      %s21 = sshll.u32 [#allocation2], 4
      %s22 = int_to_ptr.vmem [resolvable:$true] %s21
      %24 = dma.hbm_to_vmem [thread:$0]  %s0, 64, %s22, [#allocation3]
    $region5: #{tpu_custom_call.1} parent=1 // pred_fallthru
      _
    // Predicated region
    $region6: #{tpu_custom_call.1} parent=1 // pred_check
      _
    $region7: #{tpu_custom_call.1} parent=1 // pred_check_branch
      %26 = sbr.rel (0) target = $region9
    $region8: #{tpu_custom_call.1} parent=1 // pred_region
      %s28 = ssub.s32 2048, 2048
      %29 = vsyncadd [#allocation6], %s28
      %s30 = sshll.u32 [#allocation5], 4
      %s31 = int_to_ptr.vmem [resolvable:$true] %s30
      %36 = dma.hbm_to_vmem [thread:$0]  %s1, 2048, %s31, [#allocation6], 128, 128, 8
    $region9: #{tpu_custom_call.1} parent=1 // pred_fallthru
      _
    // Predicated region
    $region10: #{tpu_custom_call.1} parent=1 // pred_check
      _
    $region11: #{tpu_custom_call.1} parent=1 // pred_check_branch
      %38 = sbr.rel (0) target = $region13
    $region12: #{tpu_custom_call.1} parent=1 // pred_region
      _
    $region13: #{tpu_custom_call.1} parent=1 // pred_fallthru
      _
    // Predicated region
    $region14: #{tpu_custom_call.1} parent=1 // pred_check
      _
    $region15: #{tpu_custom_call.1} parent=1 // pred_check_branch
      %40 = sbr.rel (0) target = $region17
    $region16: #{tpu_custom_call.1} parent=1 // pred_region
      %s42 = ssub.s32 4096, 4096
      %43 = vsyncadd [#allocation6], %s42
      %s44 = sshll.u32 [#allocation7], 4
      %s45 = int_to_ptr.vmem [resolvable:$true] %s44
      %50 = dma.hbm_to_vmem [thread:$0]  %s3, 4096, %s45, [#allocation6], 128, 128, 8
    $region17: #{tpu_custom_call.1} parent=1 // pred_fallthru
      _
    // Predicated region
    $region18: #{tpu_custom_call.1} parent=1 // pred_check
      _
    $region19: #{tpu_custom_call.1} parent=1 // pred_check_branch
      %52 = sbr.rel (0) target = $region21
    $region20: #{tpu_custom_call.1} parent=1 // pred_region
      %s54 = ssub.s32 2048, 2048
      %55 = vsyncadd [#allocation9], %s54
      %s56 = sshll.u32 [#allocation8], 4
      %s57 = int_to_ptr.vmem [resolvable:$true] %s56
      %62 = dma.hbm_to_vmem [thread:$0]  %s4, 2048, %s57, [#allocation9], 64, 64, 4
    $region21: #{tpu_custom_call.1} parent=1 // pred_fallthru
      _
    // Predicated region
    $region22: #{tpu_custom_call.1} parent=1 // pred_check
      _
    $region23: #{tpu_custom_call.1} parent=1 // pred_check_branch
      %64 = sbr.rel (0) target = $region25
    $region24: #{tpu_custom_call.1} parent=1 // pred_region
      _
    $region25: #{tpu_custom_call.1} parent=1 // pred_fallthru
      _
    // Predicated region
    $region26: #{tpu_custom_call.1} parent=1 // pred_check
      _
    $region27: #{tpu_custom_call.1} parent=1 // pred_check_branch
      %66 = sbr.rel (0) target = $region29
    $region28: #{tpu_custom_call.1} parent=1 // pred_region
      %67 = dma.done [#allocation3], 64
    $region29: #{tpu_custom_call.1} parent=1 // pred_fallthru
      _
    // Predicated region
    $region30: #{tpu_custom_call.1} parent=1 // pred_check
      _
    $region31: #{tpu_custom_call.1} parent=1 // pred_check_branch
      %69 = sbr.rel (0) target = $region33
    $region32: #{tpu_custom_call.1} parent=1 // pred_region
      %70 = dma.done [#allocation6], 2048
    $region33: #{tpu_custom_call.1} parent=1 // pred_fallthru
      _
    // Predicated region
    $region34: #{tpu_custom_call.1} parent=1 // pred_check
      _
    $region35: #{tpu_custom_call.1} parent=1 // pred_check_branch
      %72 = sbr.rel (0) target = $region37
    $region36: #{tpu_custom_call.1} parent=1 // pred_region
      %73 = dma.done [#allocation6], 4096
    $region37: #{tpu_custom_call.1} parent=1 // pred_fallthru
      _
    // Predicated region
    $region38: #{tpu_custom_call.1} parent=1 // pred_check
      _
    $region39: #{tpu_custom_call.1} parent=1 // pred_check_branch
      %75 = sbr.rel (0) target = $region41
    $region40: #{tpu_custom_call.1} parent=1 // pred_region
      %76 = dma.done [#allocation9], 2048
    $region41: #{tpu_custom_call.1} parent=1 // pred_fallthru
      _
    %v78 = vld [vmem:[#allocation2] sm:$0xf]
    %v79 = vpack.c.bf16 %v78, %v78
    %v80 = vld [vmem:[#allocation5] sm:$0xff]
    %v81 = vld [vmem:[#allocation5 + $0x8] sm:$0xff]
    %v82 = vld [vmem:[#allocation5 + $0x10] sm:$0xff]
    %v83 = vld [vmem:[#allocation5 + $0x18] sm:$0xff]
    %v84 = vld [vmem:[#allocation5 + $0x20] sm:$0xff]
    %v85 = vld [vmem:[#allocation5 + $0x28] sm:$0xff]
    %v86 = vld [vmem:[#allocation5 + $0x30] sm:$0xff]
    %v87 = vld [vmem:[#allocation5 + $0x38] sm:$0xff]
    %v88 = vld [vmem:[#allocation5 + $0x40] sm:$0xff]
    %v89 = vld [vmem:[#allocation5 + $0x48] sm:$0xff]
    %v90 = vld [vmem:[#allocation5 + $0x50] sm:$0xff]
    %v91 = vld [vmem:[#allocation5 + $0x58] sm:$0xff]
    %v92 = vld [vmem:[#allocation5 + $0x60] sm:$0xff]
    %v93 = vld [vmem:[#allocation5 + $0x68] sm:$0xff]
    %v94 = vld [vmem:[#allocation5 + $0x70] sm:$0xff]
    %v95 = vld [vmem:[#allocation5 + $0x78] sm:$0xff]
    %v96 = vld [vmem:[%s2] sm:$0x3]
    %v98 = vlaneseq
    %v99 = vshrl.u32 %v98, 7
    %v100 = vsub.s32 0, %v99
    %v101 = vrot.slane %v96, %v100
    %v102 = vlaneseq
    %v103 = vshrl.u32 %v102, 7
    %v104 = vsub.s32 1, %v103
    %v105 = vrot.slane %v96, %v104
    %v124 = vunpack.c.l.b16 %v80
    %v125 = vunpack.c.h.b16 %v80
    %v126 = vunpack.c.l.b16 %v81
    %v127 = vunpack.c.h.b16 %v81
    %v128 = vunpack.c.l.b16 %v82
    %v129 = vunpack.c.h.b16 %v82
    %v130 = vunpack.c.l.b16 %v83
    %v131 = vunpack.c.h.b16 %v83
    %v132 = vunpack.c.l.b16 %v84
    %v133 = vunpack.c.h.b16 %v84
    %v134 = vunpack.c.l.b16 %v85
    %v135 = vunpack.c.h.b16 %v85
    %v136 = vunpack.c.l.b16 %v86
    %v137 = vunpack.c.h.b16 %v86
    %v138 = vunpack.c.l.b16 %v87
    %v139 = vunpack.c.h.b16 %v87
    %v140 = vunpack.c.l.b16 %v88
    %v141 = vunpack.c.h.b16 %v88
    %v142 = vunpack.c.l.b16 %v89
    %v143 = vunpack.c.h.b16 %v89
    %v144 = vunpack.c.l.b16 %v90
    %v145 = vunpack.c.h.b16 %v90
    %v146 = vunpack.c.l.b16 %v91
    %v147 = vunpack.c.h.b16 %v91
    %v148 = vunpack.c.l.b16 %v92
    %v149 = vunpack.c.h.b16 %v92
    %v150 = vunpack.c.l.b16 %v93
    %v151 = vunpack.c.h.b16 %v93
    %v152 = vunpack.c.l.b16 %v94
    %v153 = vunpack.c.h.b16 %v94
    %v154 = vunpack.c.l.b16 %v95
    %v155 = vunpack.c.h.b16 %v95
    %v156 = vpack.c.b16 %v126, %v124
    %v157 = vpack.c.b16 %v127, %v125
    %v158 = vpack.c.b16 %v130, %v128
    %v159 = vpack.c.b16 %v131, %v129
    %v160 = vpack.c.b16 %v134, %v132
    %v161 = vpack.c.b16 %v135, %v133
    %v162 = vpack.c.b16 %v138, %v136
    %v163 = vpack.c.b16 %v139, %v137
    %v164 = vpack.c.b16 %v142, %v140
    %v165 = vpack.c.b16 %v143, %v141
    %v166 = vpack.c.b16 %v146, %v144
    %v167 = vpack.c.b16 %v147, %v145
    %v168 = vpack.c.b16 %v150, %v148
    %v169 = vpack.c.b16 %v151, %v149
    %v170 = vpack.c.b16 %v154, %v152
    %v171 = vpack.c.b16 %v155, %v153
    %188 = vmatprep.subr.bf16.mxu0 %v157
    %189 = vmatpush1.bf16.msra.mxu0 %v156
    %190 = vmatprep.subr.bf16.mxu0 %v159
    %191 = vmatpush1.bf16.msra.mxu0 %v158
    %192 = vmatprep.subr.bf16.mxu0 %v161
    %193 = vmatpush1.bf16.msra.mxu0 %v160
    %194 = vmatprep.subr.bf16.mxu0 %v163
    %195 = vmatpush1.bf16.msra.mxu0 %v162
    %196 = vmatprep.subr.bf16.mxu0 %v165
    %197 = vmatpush1.bf16.msra.mxu0 %v164
    %198 = vmatprep.subr.bf16.mxu0 %v167
    %199 = vmatpush1.bf16.msra.mxu0 %v166
    %200 = vmatprep.subr.bf16.mxu0 %v169
    %201 = vmatpush1.bf16.msra.mxu0 %v168
    %202 = vmatprep.subr.bf16.mxu0 %v171
    %203 = vmatpush1.bf16.msra.mxu0 %v170
    %204 = vmatprep.subr.bf16.mxu0 0
    %205 = vmatpush1.bf16.msra.mxu0 0
    %206 = vmatprep.subr.bf16.mxu0 0
    %207 = vmatpush1.bf16.msra.mxu0 0
    %208 = vmatprep.subr.bf16.mxu0 0
    %209 = vmatpush1.bf16.msra.mxu0 0
    %210 = vmatprep.subr.bf16.mxu0 0
    %211 = vmatpush1.bf16.msra.mxu0 0
    %212 = vmatprep.subr.bf16.mxu0 0
    %213 = vmatpush1.bf16.msra.mxu0 0
    %214 = vmatprep.subr.bf16.mxu0 0
    %215 = vmatpush1.bf16.msra.mxu0 0
    %216 = vmatprep.subr.bf16.mxu0 0
    %217 = vmatpush1.bf16.msra.mxu0 0
    %218 = vmatprep.subr.bf16.mxu0 0
    %219 = vmatpush1.bf16.msra.mxu0 0
    %220 = vmatprep.mubr.bf16.mxu0 0
    %221 = vmatmul.mubr.bf16.gmra.mrb[0].mxu0 %v79
    %v222 = vpop.f32.mrb[0].mxu0
    %v223 = vadd.f32 %v101, %v222
    %v224 = vpop.f32.mrb[0].mxu0
    %v225 = vadd.f32 %v105, %v224
    %v226 = vpop.f32.mrb[0].mxu0
    %v227 = vpop.f32.mrb[0].mxu0
    %228 = vdwg.mxu0
    %v229 = vmax.f32 %v223, 0.0
    %v230 = vmax.f32 %v225, 0.0
    %v231 = vld [vmem:[#allocation7] sm:$0xff]
    %v232 = vld [vmem:[#allocation7 + $0x8] sm:$0xff]
    %v233 = vld [vmem:[#allocation7 + $0x10] sm:$0xff]
    %v234 = vld [vmem:[#allocation7 + $0x18] sm:$0xff]
    %v235 = vld [vmem:[#allocation7 + $0x20] sm:$0xff]
    %v236 = vld [vmem:[#allocation7 + $0x28] sm:$0xff]
    %v237 = vld [vmem:[#allocation7 + $0x30] sm:$0xff]
    %v238 = vld [vmem:[#allocation7 + $0x38] sm:$0xff]
    %v239 = vld [vmem:[#allocation7 + $0x40] sm:$0xff]
    %v240 = vld [vmem:[#allocation7 + $0x48] sm:$0xff]
    %v241 = vld [vmem:[#allocation7 + $0x50] sm:$0xff]
    %v242 = vld [vmem:[#allocation7 + $0x58] sm:$0xff]
    %v243 = vld [vmem:[#allocation7 + $0x60] sm:$0xff]
    %v244 = vld [vmem:[#allocation7 + $0x68] sm:$0xff]
    %v245 = vld [vmem:[#allocation7 + $0x70] sm:$0xff]
    %v246 = vld [vmem:[#allocation7 + $0x78] sm:$0xff]
    %v247 = vld [vmem:[#allocation7 + $0x80] sm:$0xff]
    %v248 = vld [vmem:[#allocation7 + $0x88] sm:$0xff]
    %v249 = vld [vmem:[#allocation7 + $0x90] sm:$0xff]
    %v250 = vld [vmem:[#allocation7 + $0x98] sm:$0xff]
    %v251 = vld [vmem:[#allocation7 + $0xa0] sm:$0xff]
    %v252 = vld [vmem:[#allocation7 + $0xa8] sm:$0xff]
    %v253 = vld [vmem:[#allocation7 + $0xb0] sm:$0xff]
    %v254 = vld [vmem:[#allocation7 + $0xb8] sm:$0xff]
    %v255 = vld [vmem:[#allocation7 + $0xc0] sm:$0xff]
    %v256 = vld [vmem:[#allocation7 + $0xc8] sm:$0xff]
    %v257 = vld [vmem:[#allocation7 + $0xd0] sm:$0xff]
    %v258 = vld [vmem:[#allocation7 + $0xd8] sm:$0xff]
    %v259 = vld [vmem:[#allocation7 + $0xe0] sm:$0xff]
    %v260 = vld [vmem:[#allocation7 + $0xe8] sm:$0xff]
    %v261 = vld [vmem:[#allocation7 + $0xf0] sm:$0xff]
    %v262 = vld [vmem:[#allocation7 + $0xf8] sm:$0xff]
    %v263 = vpack.c.bf16 %v229, %v229
    %v264 = vpack.c.bf16 %v230, %v230
    %v297 = vunpack.c.l.b16 %v231
    %v298 = vunpack.c.h.b16 %v231
    %v299 = vunpack.c.l.b16 %v232
    %v300 = vunpack.c.h.b16 %v232
    %v301 = vunpack.c.l.b16 %v233
    %v302 = vunpack.c.h.b16 %v233
    %v303 = vunpack.c.l.b16 %v234
    %v304 = vunpack.c.h.b16 %v234
    %v305 = vunpack.c.l.b16 %v235
    %v306 = vunpack.c.h.b16 %v235
    %v307 = vunpack.c.l.b16 %v236
    %v308 = vunpack.c.h.b16 %v236
    %v309 = vunpack.c.l.b16 %v237
    %v310 = vunpack.c.h.b16 %v237
    %v311 = vunpack.c.l.b16 %v238
    %v312 = vunpack.c.h.b16 %v238
    %v313 = vunpack.c.l.b16 %v239
    %v314 = vunpack.c.h.b16 %v239
    %v315 = vunpack.c.l.b16 %v240
    %v316 = vunpack.c.h.b16 %v240
    %v317 = vunpack.c.l.b16 %v241
    %v318 = vunpack.c.h.b16 %v241
    %v319 = vunpack.c.l.b16 %v242
    %v320 = vunpack.c.h.b16 %v242
    %v321 = vunpack.c.l.b16 %v243
    %v322 = vunpack.c.h.b16 %v243
    %v323 = vunpack.c.l.b16 %v244
    %v324 = vunpack.c.h.b16 %v244
    %v325 = vunpack.c.l.b16 %v245
    %v326 = vunpack.c.h.b16 %v245
    %v327 = vunpack.c.l.b16 %v246
    %v328 = vunpack.c.h.b16 %v246
    %v329 = vunpack.c.l.b16 %v247
    %v330 = vunpack.c.h.b16 %v247
    %v331 = vunpack.c.l.b16 %v248
    %v332 = vunpack.c.h.b16 %v248
    %v333 = vunpack.c.l.b16 %v249
    %v334 = vunpack.c.h.b16 %v249
    %v335 = vunpack.c.l.b16 %v250
    %v336 = vunpack.c.h.b16 %v250
    %v337 = vunpack.c.l.b16 %v251
    %v338 = vunpack.c.h.b16 %v251
    %v339 = vunpack.c.l.b16 %v252
    %v340 = vunpack.c.h.b16 %v252
    %v341 = vunpack.c.l.b16 %v253
    %v342 = vunpack.c.h.b16 %v253
    %v343 = vunpack.c.l.b16 %v254
    %v344 = vunpack.c.h.b16 %v254
    %v345 = vunpack.c.l.b16 %v255
    %v346 = vunpack.c.h.b16 %v255
    %v347 = vunpack.c.l.b16 %v256
    %v348 = vunpack.c.h.b16 %v256
    %v349 = vunpack.c.l.b16 %v257
    %v350 = vunpack.c.h.b16 %v257
    %v351 = vunpack.c.l.b16 %v258
    %v352 = vunpack.c.h.b16 %v258
    %v353 = vunpack.c.l.b16 %v259
    %v354 = vunpack.c.h.b16 %v259
    %v355 = vunpack.c.l.b16 %v260
    %v356 = vunpack.c.h.b16 %v260
    %v357 = vunpack.c.l.b16 %v261
    %v358 = vunpack.c.h.b16 %v261
    %v359 = vunpack.c.l.b16 %v262
    %v360 = vunpack.c.h.b16 %v262
    %v361 = vpack.c.b16 %v299, %v297
    %v362 = vpack.c.b16 %v300, %v298
    %v363 = vpack.c.b16 %v303, %v301
    %v364 = vpack.c.b16 %v304, %v302
    %v365 = vpack.c.b16 %v307, %v305
    %v366 = vpack.c.b16 %v308, %v306
    %v367 = vpack.c.b16 %v311, %v309
    %v368 = vpack.c.b16 %v312, %v310
    %v369 = vpack.c.b16 %v315, %v313
    %v370 = vpack.c.b16 %v316, %v314
    %v371 = vpack.c.b16 %v319, %v317
    %v372 = vpack.c.b16 %v320, %v318
    %v373 = vpack.c.b16 %v323, %v321
    %v374 = vpack.c.b16 %v324, %v322
    %v375 = vpack.c.b16 %v327, %v325
    %v376 = vpack.c.b16 %v328, %v326
    %v377 = vpack.c.b16 %v331, %v329
    %v378 = vpack.c.b16 %v332, %v330
    %v379 = vpack.c.b16 %v335, %v333
    %v380 = vpack.c.b16 %v336, %v334
    %v381 = vpack.c.b16 %v339, %v337
    %v382 = vpack.c.b16 %v340, %v338
    %v383 = vpack.c.b16 %v343, %v341
    %v384 = vpack.c.b16 %v344, %v342
    %v385 = vpack.c.b16 %v347, %v345
    %v386 = vpack.c.b16 %v348, %v346
    %v387 = vpack.c.b16 %v351, %v349
    %v388 = vpack.c.b16 %v352, %v350
    %v389 = vpack.c.b16 %v355, %v353
    %v390 = vpack.c.b16 %v356, %v354
    %v391 = vpack.c.b16 %v359, %v357
    %v392 = vpack.c.b16 %v360, %v358
    %425 = vmatprep.subr.bf16.mxu0 %v362
    %426 = vmatpush1.bf16.msra.mxu0 %v361
    %427 = vmatprep.subr.bf16.mxu0 %v364
    %428 = vmatpush1.bf16.msra.mxu0 %v363
    %429 = vmatprep.subr.bf16.mxu0 %v366
    %430 = vmatpush1.bf16.msra.mxu0 %v365
    %431 = vmatprep.subr.bf16.mxu0 %v368
    %432 = vmatpush1.bf16.msra.mxu0 %v367
    %433 = vmatprep.subr.bf16.mxu0 %v370
    %434 = vmatpush1.bf16.msra.mxu0 %v369
    %435 = vmatprep.subr.bf16.mxu0 %v372
    %436 = vmatpush1.bf16.msra.mxu0 %v371
    %437 = vmatprep.subr.bf16.mxu0 %v374
    %438 = vmatpush1.bf16.msra.mxu0 %v373
    %439 = vmatprep.subr.bf16.mxu0 %v376
    %440 = vmatpush1.bf16.msra.mxu0 %v375
    %441 = vmatprep.subr.bf16.mxu0 %v378
    %442 = vmatpush1.bf16.msra.mxu0 %v377
    %443 = vmatprep.subr.bf16.mxu0 %v380
    %444 = vmatpush1.bf16.msra.mxu0 %v379
    %445 = vmatprep.subr.bf16.mxu0 %v382
    %446 = vmatpush1.bf16.msra.mxu0 %v381
    %447 = vmatprep.subr.bf16.mxu0 %v384
    %448 = vmatpush1.bf16.msra.mxu0 %v383
    %449 = vmatprep.subr.bf16.mxu0 %v386
    %450 = vmatpush1.bf16.msra.mxu0 %v385
    %451 = vmatprep.subr.bf16.mxu0 %v388
    %452 = vmatpush1.bf16.msra.mxu0 %v387
    %453 = vmatprep.subr.bf16.mxu0 %v390
    %454 = vmatpush1.bf16.msra.mxu0 %v389
    %455 = vmatprep.subr.bf16.mxu0 %v392
    %456 = vmatpush1.bf16.msra.mxu0 %v391
    %457 = vmatprep.mubr.bf16.mxu0 %v264
    %458 = vmatmul.mubr.bf16.gmra.mrb[0].mxu0 %v263
    %v459 = vpop.f32.mrb[0].mxu0
    %v460 = vadd.f32 0.0, %v459
    %v461 = vpop.f32.mrb[0].mxu0
    %v462 = vadd.f32 0.0, %v461
    %v463 = vpop.f32.mrb[0].mxu0
    %v464 = vpop.f32.mrb[0].mxu0
    %465 = vdwg.mxu0
    %v466 = vsub.f32 %v229, %v460
    %v467 = vsub.f32 %v230, %v462
    %v468 = vmul.f32 %v466, %v466
    %v469 = vmul.f32 %v467, %v467
    %v470 = vpack.c.bf16 %v468, %v468
    %v471 = vpack.c.bf16 %v469, %v469
    %472 = vmatprep.subr.bf16.mxu0 %v362
    %473 = vmatpush1.bf16.msra.mxu0 %v361
    %474 = vmatprep.subr.bf16.mxu0 %v364
    %475 = vmatpush1.bf16.msra.mxu0 %v363
    %476 = vmatprep.subr.bf16.mxu0 %v366
    %477 = vmatpush1.bf16.msra.mxu0 %v365
    %478 = vmatprep.subr.bf16.mxu0 %v368
    %479 = vmatpush1.bf16.msra.mxu0 %v367
    %480 = vmatprep.subr.bf16.mxu0 %v370
    %481 = vmatpush1.bf16.msra.mxu0 %v369
    %482 = vmatprep.subr.bf16.mxu0 %v372
    %483 = vmatpush1.bf16.msra.mxu0 %v371
    %484 = vmatprep.subr.bf16.mxu0 %v374
    %485 = vmatpush1.bf16.msra.mxu0 %v373
    %486 = vmatprep.subr.bf16.mxu0 %v376
    %487 = vmatpush1.bf16.msra.mxu0 %v375
    %488 = vmatprep.subr.bf16.mxu0 %v378
    %489 = vmatpush1.bf16.msra.mxu0 %v377
    %490 = vmatprep.subr.bf16.mxu0 %v380
    %491 = vmatpush1.bf16.msra.mxu0 %v379
    %492 = vmatprep.subr.bf16.mxu0 %v382
    %493 = vmatpush1.bf16.msra.mxu0 %v381
    %494 = vmatprep.subr.bf16.mxu0 %v384
    %495 = vmatpush1.bf16.msra.mxu0 %v383
    %496 = vmatprep.subr.bf16.mxu0 %v386
    %497 = vmatpush1.bf16.msra.mxu0 %v385
    %498 = vmatprep.subr.bf16.mxu0 %v388
    %499 = vmatpush1.bf16.msra.mxu0 %v387
    %500 = vmatprep.subr.bf16.mxu0 %v390
    %501 = vmatpush1.bf16.msra.mxu0 %v389
    %502 = vmatprep.subr.bf16.mxu0 %v392
    %503 = vmatpush1.bf16.msra.mxu0 %v391
    %504 = vmatprep.mubr.bf16.mxu0 %v471
    %505 = vmatmul.mubr.bf16.gmra.mrb[0].mxu0 %v470
    %v506 = vpop.f32.mrb[0].mxu0
    %v507 = vadd.f32 0.0, %v506
    %v508 = vpop.f32.mrb[0].mxu0
    %v509 = vadd.f32 0.0, %v508
    %v510 = vpop.f32.mrb[0].mxu0
    %v511 = vpop.f32.mrb[0].mxu0
    %512 = vdwg.mxu0
    %v513 = vmax.f32 %v507, 0.0
    %v514 = vmax.f32 %v509, 0.0
    %v515 = vadd.f32 %v513, 1e-05
    %v516 = vadd.f32 %v514, 1e-05
    %v517 = vrsqrt.pop %v515
    %v518 = vrsqrt.pop %v516
    %v519 = vmul.f32 %v466, %v517
    %v520 = vmul.f32 %v467, %v518
    %v521 = vpack.c.bf16 %v519, %v519
    %v522 = vpack.c.bf16 %v520, %v520
    %v523 = vld [vmem:[#allocation8] sm:$0xf]
    %v524 = vld [vmem:[#allocation8 + $0x4] sm:$0xf]
    %v525 = vld [vmem:[#allocation8 + $0x8] sm:$0xf]
    %v526 = vld [vmem:[#allocation8 + $0xc] sm:$0xf]
    %v527 = vld [vmem:[#allocation8 + $0x10] sm:$0xf]
    %v528 = vld [vmem:[#allocation8 + $0x14] sm:$0xf]
    %v529 = vld [vmem:[#allocation8 + $0x18] sm:$0xf]
    %v530 = vld [vmem:[#allocation8 + $0x1c] sm:$0xf]
    %v531 = vld [vmem:[#allocation8 + $0x20] sm:$0xf]
    %v532 = vld [vmem:[#allocation8 + $0x24] sm:$0xf]
    %v533 = vld [vmem:[#allocation8 + $0x28] sm:$0xf]
    %v534 = vld [vmem:[#allocation8 + $0x2c] sm:$0xf]
    %v535 = vld [vmem:[#allocation8 + $0x30] sm:$0xf]
    %v536 = vld [vmem:[#allocation8 + $0x34] sm:$0xf]
    %v537 = vld [vmem:[#allocation8 + $0x38] sm:$0xf]
    %v538 = vld [vmem:[#allocation8 + $0x3c] sm:$0xf]
    %v539 = vld [vmem:[#allocation8 + $0x40] sm:$0xf]
    %v540 = vld [vmem:[#allocation8 + $0x44] sm:$0xf]
    %v541 = vld [vmem:[#allocation8 + $0x48] sm:$0xf]
    %v542 = vld [vmem:[#allocation8 + $0x4c] sm:$0xf]
    %v543 = vld [vmem:[#allocation8 + $0x50] sm:$0xf]
    %v544 = vld [vmem:[#allocation8 + $0x54] sm:$0xf]
    %v545 = vld [vmem:[#allocation8 + $0x58] sm:$0xf]
    %v546 = vld [vmem:[#allocation8 + $0x5c] sm:$0xf]
    %v547 = vld [vmem:[#allocation8 + $0x60] sm:$0xf]
    %v548 = vld [vmem:[#allocation8 + $0x64] sm:$0xf]
    %v549 = vld [vmem:[#allocation8 + $0x68] sm:$0xf]
    %v550 = vld [vmem:[#allocation8 + $0x6c] sm:$0xf]
    %v551 = vld [vmem:[#allocation8 + $0x70] sm:$0xf]
    %v552 = vld [vmem:[#allocation8 + $0x74] sm:$0xf]
    %v553 = vld [vmem:[#allocation8 + $0x78] sm:$0xf]
    %v554 = vld [vmem:[#allocation8 + $0x7c] sm:$0xf]
    %v587 = vunpack.c.l.b16 %v523
    %v588 = vunpack.c.l.b16 %v524
    %v589 = vunpack.c.l.b16 %v525
    %v590 = vunpack.c.l.b16 %v526
    %v591 = vunpack.c.l.b16 %v527
    %v592 = vunpack.c.l.b16 %v528
    %v593 = vunpack.c.l.b16 %v529
    %v594 = vunpack.c.l.b16 %v530
    %v595 = vunpack.c.l.b16 %v531
    %v596 = vunpack.c.l.b16 %v532
    %v597 = vunpack.c.l.b16 %v533
    %v598 = vunpack.c.l.b16 %v534
    %v599 = vunpack.c.l.b16 %v535
    %v600 = vunpack.c.l.b16 %v536
    %v601 = vunpack.c.l.b16 %v537
    %v602 = vunpack.c.l.b16 %v538
    %v603 = vunpack.c.l.b16 %v539
    %v604 = vunpack.c.l.b16 %v540
    %v605 = vunpack.c.l.b16 %v541
    %v606 = vunpack.c.l.b16 %v542
    %v607 = vunpack.c.l.b16 %v543
    %v608 = vunpack.c.l.b16 %v544
    %v609 = vunpack.c.l.b16 %v545
    %v610 = vunpack.c.l.b16 %v546
    %v611 = vunpack.c.l.b16 %v547
    %v612 = vunpack.c.l.b16 %v548
    %v613 = vunpack.c.l.b16 %v549
    %v614 = vunpack.c.l.b16 %v550
    %v615 = vunpack.c.l.b16 %v551
    %v616 = vunpack.c.l.b16 %v552
    %v617 = vunpack.c.l.b16 %v553
    %v618 = vunpack.c.l.b16 %v554
    %v619 = vpack.c.b16 %v588, %v587
    %v620 = vpack.c.b16 %v590, %v589
    %v621 = vpack.c.b16 %v592, %v591
    %v622 = vpack.c.b16 %v594, %v593
    %v623 = vpack.c.b16 %v596, %v595
    %v624 = vpack.c.b16 %v598, %v597
    %v625 = vpack.c.b16 %v600, %v599
    %v626 = vpack.c.b16 %v602, %v601
    %v627 = vpack.c.b16 %v604, %v603
    %v628 = vpack.c.b16 %v606, %v605
    %v629 = vpack.c.b16 %v608, %v607
    %v630 = vpack.c.b16 %v610, %v609
    %v631 = vpack.c.b16 %v612, %v611
    %v632 = vpack.c.b16 %v614, %v613
    %v633 = vpack.c.b16 %v616, %v615
    %v634 = vpack.c.b16 %v618, %v617
    %651 = vmatprep.subr.bf16.mxu0 0
    %652 = vmatpush1.bf16.msra.mxu0 %v619
    %653 = vmatprep.subr.bf16.mxu0 0
    %654 = vmatpush1.bf16.msra.mxu0 %v620
    %655 = vmatprep.subr.bf16.mxu0 0
    %656 = vmatpush1.bf16.msra.mxu0 %v621
    %657 = vmatprep.subr.bf16.mxu0 0
    %658 = vmatpush1.bf16.msra.mxu0 %v622
    %659 = vmatprep.subr.bf16.mxu0 0
    %660 = vmatpush1.bf16.msra.mxu0 %v623
    %661 = vmatprep.subr.bf16.mxu0 0
    %662 = vmatpush1.bf16.msra.mxu0 %v624
    %663 = vmatprep.subr.bf16.mxu0 0
    %664 = vmatpush1.bf16.msra.mxu0 %v625
    %665 = vmatprep.subr.bf16.mxu0 0
    %666 = vmatpush1.bf16.msra.mxu0 %v626
    %667 = vmatprep.subr.bf16.mxu0 0
    %668 = vmatpush1.bf16.msra.mxu0 %v627
    %669 = vmatprep.subr.bf16.mxu0 0
    %670 = vmatpush1.bf16.msra.mxu0 %v628
    %671 = vmatprep.subr.bf16.mxu0 0
    %672 = vmatpush1.bf16.msra.mxu0 %v629
    %673 = vmatprep.subr.bf16.mxu0 0
    %674 = vmatpush1.bf16.msra.mxu0 %v630
    %675 = vmatprep.subr.bf16.mxu0 0
    %676 = vmatpush1.bf16.msra.mxu0 %v631
    %677 = vmatprep.subr.bf16.mxu0 0
    %678 = vmatpush1.bf16.msra.mxu0 %v632
    %679 = vmatprep.subr.bf16.mxu0 0
    %680 = vmatpush1.bf16.msra.mxu0 %v633
    %681 = vmatprep.subr.bf16.mxu0 0
    %682 = vmatpush1.bf16.msra.mxu0 %v634
    %683 = vmatprep.mubr.bf16.mxu0 %v522
    %684 = vmatmul.mubr.bf16.gmra.mrb[0].mxu0 %v521
    %v685 = vpop.f32.mrb[0].mxu0
    %v686 = vadd.f32 0.0, %v685
    %v687 = vpop.f32.mrb[0].mxu0
    %v688 = vpop.f32.mrb[0].mxu0
    %v689 = vpop.f32.mrb[0].mxu0
    %690 = vdwg.mxu0
    %v691 = vadd.f32 %v78, %v686
    %v692 = vld [vmem:[%s5] sm:$0x1]
    %v694 = vlaneseq
    %v695 = vshrl.u32 %v694, 7
    %v696 = vsub.s32 0, %v695
    %v697 = vrot.slane %v692, %v696
    %v699 = vadd.f32 %v691, %v697
    %700 = vst [vmem:[#allocation10] sm:$0xf] %v699
    // Predicated region
    $region42: #{tpu_custom_call.1} parent=1 // pred_check
      _
    $region43: #{tpu_custom_call.1} parent=1 // pred_check_branch
      %702 = sbr.rel (0) target = $region45
    $region44: #{tpu_custom_call.1} parent=1 // pred_region
      %s704 = ssub.s32 64, 64
      %705 = vsyncadd [#allocation4], %s704
      %s707 = sshll.u32 [#allocation10], 4
      %s708 = int_to_ptr.vmem [resolvable:$true] %s707
      %710 = dma.vmem_to_hbm [thread:$0]  %s708, 64, %s6, [#allocation4]
    $region45: #{tpu_custom_call.1} parent=1 // pred_fallthru
      _
    // Predicated region
    $region46: #{tpu_custom_call.1} parent=1 // pred_check
      _
    $region47: #{tpu_custom_call.1} parent=1 // pred_check_branch
      %712 = sbr.rel (0) target = $region49
    $region48: #{tpu_custom_call.1} parent=1 // pred_region
      %713 = dma.done [#allocation4], 64
    $region49: #{tpu_custom_call.1} parent=1 // pred_fallthru
      _
    %714 = vsyncpa [#allocation3], 1
    %715 = vsyncpa [#allocation6], 1
    %716 = vsyncpa [#allocation9], 1
    %717 = vsyncpa [#allocation4], 1

</llo_original>
